<compile_context>
chip_gen: v7x
topology: tpu7x:2x2x1
jax: 0.10.0
libtpu: 0.0.40
codegen_flags: <defaults>
</compile_context>

<pallas_src>
import jax
import jax.numpy as jnp
from jax.experimental import pallas as pl
from jax.experimental.pallas import tpu as pltpu

TEXT_EMB = 32            # textembedder.config.hidden_size
VIDEO_EMB = 32           # vidt.output_dim
NUM_LABELS = 16          # num_topic_labels
FEAT = TEXT_EMB + VIDEO_EMB            # 64

SEQ_LEN = 8              # tokens per text sequence
NUM_FRAMES = 8           # video frames
IMG_C, IMG_H, IMG_W = 3, 16, 16
IMG_FEAT = IMG_C * IMG_H * IMG_W       # 768
VOCAB = 100

LANES = 128              # TPU lane width
OUT_ROWS = 8             # lane-dense [8,128] output slab

# packed f32 parameter-slab row offsets (all 8-aligned)
_R_WCLS = 0
_R_WPOOL = 64
_R_PVID = 96
_R_BFEAT = 128
_R_BCLS = 136
P_ROWS = 144

# contract the last dim of both operands (rhs stored transposed / lane-dense)
_TRANS_B = (((1,), (1,)), ((), ()))


# ----------------------------- Pallas kernel --------------------------------
def _fused_forward_kernel(tok_ref, img_ref, wvid_ref, p_ref, out_ref):
    # --- text pooler: mean over tokens -> linear -> tanh (lands in lanes 0:32) ---
    tok_mean = jnp.mean(tok_ref[...], axis=0, keepdims=True)                 # [1, 32]
    w_pool = p_ref[_R_WPOOL:_R_WPOOL + TEXT_EMB, :]                          # [32, 128]
    pool_pre = jnp.dot(tok_mean, w_pool,
                       preferred_element_type=jnp.float32)                   # [1, 128]

    # --- video encoder: per-frame linear with lane-dense bf16 weight -> mean -----
    w_vid = wvid_ref[...].astype(jnp.float32)                                # [32, 768]
    frame_emb = jax.lax.dot_general(img_ref[...], w_vid, _TRANS_B,
                                    preferred_element_type=jnp.float32)      # [8, 32]
    vid_mean = jnp.mean(frame_emb, axis=0, keepdims=True)                    # [1, 32]
    p_vid = p_ref[_R_PVID:_R_PVID + VIDEO_EMB, :]                            # [32, 128]
    vid_pre = jnp.dot(vid_mean, p_vid,
                      preferred_element_type=jnp.float32)                    # [1,128] lanes 32:64

    # --- features row: tanh([pool | vid] + biases); lanes 64:128 stay exactly 0 --
    b_feat = p_ref[_R_BFEAT:_R_BFEAT + 1, :]                                 # [1, 128]
    feat_row = jnp.tanh(pool_pre + vid_pre + b_feat)                         # [1, 128]
    # self.dropout(pooler_outputs) / self.dropout(features): eval-mode identity.
    # TODO(synk): training-mode dropout randomness (torch RNG) not reproduced.

    # --- classifier: one dot against the zero-padded weight (rows 64:128 hit 0s) --
    w_cls = p_ref[_R_WCLS:_R_WCLS + LANES, :]                                # [128, 128]
    b_cls = p_ref[_R_BCLS:_R_BCLS + 1, :]                                    # [1, 128]
    logits_row = jnp.dot(feat_row, w_cls,
                         preferred_element_type=jnp.float32) + b_cls         # [1,128] lanes 0:16

    # --- assemble one lane-dense [8,128] slab in registers, single unmasked store -
    row_idx = jax.lax.broadcasted_iota(jnp.int32, (OUT_ROWS, LANES), 0)
    slab = (jnp.where(row_idx == 0, logits_row, 0.0)
            + jnp.where(row_idx == 1, feat_row, 0.0))                        # rows 2:8 == 0
    out_ref[...] = slab


# --------------------------- weight-prep packing ------------------------------
def pack_small_params(w_pool, b_pool, b_vid, w_cls_t, b_cls):
    """Pack all small f32 params into one lane-dense [144,128] slab (done once)."""
    p = jnp.zeros((P_ROWS, LANES), jnp.float32)
    p = p.at[_R_WCLS:_R_WCLS + FEAT, :NUM_LABELS].set(w_cls_t)
    p = p.at[_R_WPOOL:_R_WPOOL + TEXT_EMB, :TEXT_EMB].set(w_pool)
    place = jnp.zeros((VIDEO_EMB, LANES), jnp.float32)
    place = place.at[jnp.arange(VIDEO_EMB), TEXT_EMB + jnp.arange(VIDEO_EMB)].set(1.0)
    p = p.at[_R_PVID:_R_PVID + VIDEO_EMB, :].set(place)
    p = p.at[_R_BFEAT, :TEXT_EMB].set(b_pool)
    p = p.at[_R_BFEAT, TEXT_EMB:FEAT].set(b_vid)
    p = p.at[_R_BCLS, :NUM_LABELS].set(b_cls)
    return p


# --------------------------------- wrapper -----------------------------------
@jax.jit
def vid_text_forward(token_ids, images, emb_table, w_vid_t_bf16, packed_params):
    """Fused forward (labels=None branch). Gather + flatten fused into the same jit.

    token_ids     : [1, SEQ_LEN] int32
    images        : [NUM_FRAMES, C, H, W] f32
    emb_table     : [VOCAB, TEXT_EMB] f32
    w_vid_t_bf16  : [VIDEO_EMB, IMG_FEAT] bf16  (video weight, pre-transposed, lane-dense)
    packed_params : [144, 128] f32              (see pack_small_params)
    Returns (logits [NUM_LABELS], features [FEAT]) like the torch module.
    """
    tok_embs = emb_table[token_ids[0]]                       # [SEQ_LEN, TEXT_EMB]
    img_flat = images.reshape(NUM_FRAMES, IMG_FEAT)          # [NUM_FRAMES, IMG_FEAT]

    bytes_accessed = (tok_embs.size * 4 + img_flat.size * 4 + w_vid_t_bf16.size * 2
                      + packed_params.size * 4 + OUT_ROWS * LANES * 4)
    cost = pl.CostEstimate(
        flops=2 * NUM_FRAMES * IMG_FEAT * VIDEO_EMB
              + 2 * 2 * TEXT_EMB * LANES + 2 * LANES * LANES,
        transcendentals=LANES,
        bytes_accessed=bytes_accessed)

    vmem = pl.BlockSpec(memory_space=pltpu.MemorySpace.VMEM)
    out = pl.pallas_call(
        _fused_forward_kernel,
        in_specs=[vmem, vmem, vmem, vmem],
        out_specs=vmem,
        out_shape=jax.ShapeDtypeStruct((OUT_ROWS, LANES), jnp.float32),
        cost_estimate=cost,
    )(tok_embs, img_flat, w_vid_t_bf16, packed_params)

    logits = out[0, :NUM_LABELS]
    features = out[1, :FEAT]
    return logits, features


# --------------------------------- driver ------------------------------------
if __name__ == "__main__":
    key = jax.random.PRNGKey(0)
    (k_tok, k_img, k_emb, k_pw, k_pb,
     k_vw, k_vb, k_cw, k_cb) = jax.random.split(key, 9)

    # sequence_of_texts: batch=1, 8 token ids; sequence_of_images: 8 NCHW frames.
    token_ids = jax.random.randint(k_tok, (1, SEQ_LEN), 0, VOCAB)
    images = jax.random.normal(k_img, (NUM_FRAMES, IMG_C, IMG_H, IMG_W), jnp.float32)

    # deterministic stand-in encoder parameters (external submodules in torch)
    emb_table = jax.random.normal(k_emb, (VOCAB, TEXT_EMB), jnp.float32) * 0.02
    w_pool = jax.random.normal(k_pw, (TEXT_EMB, TEXT_EMB), jnp.float32) * 0.02
    b_pool = jax.random.normal(k_pb, (TEXT_EMB,), jnp.float32) * 0.02
    w_vid = jax.random.normal(k_vw, (IMG_FEAT, VIDEO_EMB), jnp.float32) * 0.02
    b_vid = jax.random.normal(k_vb, (VIDEO_EMB,), jnp.float32) * 0.02

    # classifier: nn.Linear(TEXT_EMB + VIDEO_EMB, NUM_LABELS); weight pre-transposed.
    w_cls_t = jax.random.normal(k_cw, (FEAT, NUM_LABELS), jnp.float32) * 0.02
    b_cls = jax.random.normal(k_cb, (NUM_LABELS,), jnp.float32) * 0.02

    # -------- one-time weight prep: lane-dense packed slabs ----------------------
    w_vid_t_bf16 = w_vid.T.astype(jnp.bfloat16)          # [32, 768] bf16, contiguous DMA
    packed = pack_small_params(w_pool, b_pool, b_vid, w_cls_t, b_cls)

    logits, features = vid_text_forward(token_ids, images, emb_table,
                                        w_vid_t_bf16, packed)
    jax.block_until_ready((logits, features))

    # -------- plain-JAX reference of the same fused forward ----------------------
    tok_embs = emb_table[token_ids[0]]
    img_flat = images.reshape(NUM_FRAMES, IMG_FEAT)
    w_vid_deq = w_vid_t_bf16.astype(jnp.float32).T       # bf16-stored weight, dequantized
    pooler_r = jnp.tanh(tok_embs.mean(axis=0) @ w_pool + b_pool)
    video_r = jnp.tanh(img_flat.mean(axis=0) @ w_vid_deq + b_vid)
    feats_r = jnp.concatenate([pooler_r, video_r])
    logits_r = feats_r @ w_cls_t + b_cls

    assert logits.shape == (NUM_LABELS,) and features.shape == (FEAT,)
    assert jnp.allclose(features, feats_r, atol=5e-4, rtol=5e-4)
    assert jnp.allclose(logits, logits_r, atol=5e-4, rtol=5e-4)

    print("KERNEL_OK")
</pallas_src>

<mosaic_0001>
module attributes {stable_mosaic.version = 11 : i64} {
  func.func @_fused_forward_kernel(%arg0: memref<8x32xf32, #tpu.memory_space<vmem>>, %arg1: memref<8x768xf32, #tpu.memory_space<vmem>>, %arg2: memref<32x768xbf16, #tpu.memory_space<vmem>>, %arg3: memref<144x128xf32, #tpu.memory_space<vmem>>, %arg4: memref<8x128xf32, #tpu.memory_space<vmem>>) attributes {dimension_semantics = [], scalar_prefetch = 0 : i64, scratch_operands = 0 : i64, tpu.core_type = #tpu.core_type<tc>} {
    %c0 = arith.constant 0 : index
    %c0_0 = arith.constant 0 : index
    %0 = vector.load %arg0[%c0, %c0_0] : memref<8x32xf32, #tpu.memory_space<vmem>>, vector<8x32xf32>
    %cst = arith.constant dense<0.000000e+00> : vector<32xf32>
    %1 = vector.multi_reduction <add>, %0, %cst [0] : vector<8x32xf32> to vector<32xf32>
    %2 = vector.shape_cast %1 : vector<32xf32> to vector<1x32xf32>
    %cst_1 = arith.constant 8.000000e+00 : f32
    %3 = vector.broadcast %cst_1 : f32 to vector<1x32xf32>
    %4 = arith.divf %2, %3 : vector<1x32xf32>
    %c64 = arith.constant 64 : index
    %c0_2 = arith.constant 0 : index
    %5 = vector.load %arg3[%c64, %c0_2] : memref<144x128xf32, #tpu.memory_space<vmem>>, vector<32x128xf32>
    %cst_3 = arith.constant dense<0.000000e+00> : vector<1x128xf32>
    %6 = tpu.matmul %4, %5, %cst_3 {dimension_numbers = #tpu.dot_dimension_numbers<[1], [0], [0], [1], [0, 0, 1, 1], [], []>} : vector<1x32xf32>, vector<32x128xf32>, vector<1x128xf32> -> vector<1x128xf32>
    %c0_4 = arith.constant 0 : index
    %c0_5 = arith.constant 0 : index
    %7 = vector.load %arg2[%c0_4, %c0_5] : memref<32x768xbf16, #tpu.memory_space<vmem>>, vector<32x768xbf16>
    %8 = arith.extf %7 : vector<32x768xbf16> to vector<32x768xf32>
    %c0_6 = arith.constant 0 : index
    %c0_7 = arith.constant 0 : index
    %9 = vector.load %arg1[%c0_6, %c0_7] : memref<8x768xf32, #tpu.memory_space<vmem>>, vector<8x768xf32>
    %cst_8 = arith.constant dense<0.000000e+00> : vector<8x32xf32>
    %10 = tpu.matmul %9, %8, %cst_8 {dimension_numbers = #tpu.dot_dimension_numbers<[1], [1], [0], [0], [0, 0, 1, 0], [], []>} : vector<8x768xf32>, vector<32x768xf32>, vector<8x32xf32> -> vector<8x32xf32>
    %cst_9 = arith.constant dense<0.000000e+00> : vector<32xf32>
    %11 = vector.multi_reduction <add>, %10, %cst_9 [0] : vector<8x32xf32> to vector<32xf32>
    %12 = vector.shape_cast %11 : vector<32xf32> to vector<1x32xf32>
    %cst_10 = arith.constant 8.000000e+00 : f32
    %13 = vector.broadcast %cst_10 : f32 to vector<1x32xf32>
    %14 = arith.divf %12, %13 : vector<1x32xf32>
    %c96 = arith.constant 96 : index
    %c0_11 = arith.constant 0 : index
    %15 = vector.load %arg3[%c96, %c0_11] : memref<144x128xf32, #tpu.memory_space<vmem>>, vector<32x128xf32>
    %cst_12 = arith.constant dense<0.000000e+00> : vector<1x128xf32>
    %16 = tpu.matmul %14, %15, %cst_12 {dimension_numbers = #tpu.dot_dimension_numbers<[1], [0], [0], [1], [0, 0, 1, 1], [], []>} : vector<1x32xf32>, vector<32x128xf32>, vector<1x128xf32> -> vector<1x128xf32>
    %c128 = arith.constant 128 : index
    %c0_13 = arith.constant 0 : index
    %17 = vector.load %arg3[%c128, %c0_13] : memref<144x128xf32, #tpu.memory_space<vmem>>, vector<1x128xf32>
    %18 = arith.addf %6, %16 : vector<1x128xf32>
    %19 = arith.addf %18, %17 : vector<1x128xf32>
    %20 = math.tanh %19 : vector<1x128xf32>
    %c0_14 = arith.constant 0 : index
    %c0_15 = arith.constant 0 : index
    %21 = vector.load %arg3[%c0_14, %c0_15] : memref<144x128xf32, #tpu.memory_space<vmem>>, vector<128x128xf32>
    %c136 = arith.constant 136 : index
    %c0_16 = arith.constant 0 : index
    %22 = vector.load %arg3[%c136, %c0_16] : memref<144x128xf32, #tpu.memory_space<vmem>>, vector<1x128xf32>
    %cst_17 = arith.constant dense<0.000000e+00> : vector<1x128xf32>
    %23 = tpu.matmul %20, %21, %cst_17 {dimension_numbers = #tpu.dot_dimension_numbers<[1], [0], [0], [1], [0, 0, 1, 1], [], []>} : vector<1x128xf32>, vector<128x128xf32>, vector<1x128xf32> -> vector<1x128xf32>
    %24 = arith.addf %23, %22 : vector<1x128xf32>
    %25 = tpu.iota {dimensions = array<i32: 0>} : vector<8x128xi32>
    %c0_i32 = arith.constant 0 : i32
    %26 = vector.broadcast %c0_i32 : i32 to vector<8x128xi32>
    %27 = arith.cmpi eq, %25, %26 : vector<8x128xi32>
    %cst_18 = arith.constant 0.000000e+00 : f32
    %28 = vector.shape_cast %24 : vector<1x128xf32> to vector<1x128xf32>
    %29 = vector.broadcast %28 : vector<1x128xf32> to vector<8x128xf32>
    %30 = vector.broadcast %cst_18 : f32 to vector<8x128xf32>
    %31 = arith.select %27, %29, %30 : vector<8x128xi1>, vector<8x128xf32>
    %c1_i32 = arith.constant 1 : i32
    %32 = vector.broadcast %c1_i32 : i32 to vector<8x128xi32>
    %33 = arith.cmpi eq, %25, %32 : vector<8x128xi32>
    %cst_19 = arith.constant 0.000000e+00 : f32
    %34 = vector.shape_cast %20 : vector<1x128xf32> to vector<1x128xf32>
    %35 = vector.broadcast %34 : vector<1x128xf32> to vector<8x128xf32>
    %36 = vector.broadcast %cst_19 : f32 to vector<8x128xf32>
    %37 = arith.select %33, %35, %36 : vector<8x128xi1>, vector<8x128xf32>
    %38 = arith.addf %31, %37 : vector<8x128xf32>
    %c0_20 = arith.constant 0 : index
    %c0_21 = arith.constant 0 : index
    %39 = vector.load %arg4[%c0_20, %c0_21] : memref<8x128xf32, #tpu.memory_space<vmem>>, vector<8x128xf32>
    tpu.vector_store %arg4[%c0_20, %c0_21], %38 {strides = array<i32>} : memref<8x128xf32, #tpu.memory_space<vmem>>, vector<8x128xf32>,
    return
  }
}

</mosaic_0001>

<llo_original>
// kernel: vid_text_forward.1
$region0: #{vid_text_forward.1}
  #allocation0 [shape = 'u32[]', space=smem, size = 0x4, offset = 0x4, fixed_abs, tag = 'smem constant byte address 0x4 - core index']
  #allocation1 [shape = 'u32[144,128]{1,0:T(1,128)}', space=vmem, size = 0x12000, scoped, tag = 'internal scratch']
  %s0 = inlined_call_operand.vmem [shape: f32[8,32], index: 0, kind: input, shape index: {}]
  %s1 = inlined_call_operand.vmem [shape: f32[8,768], index: 1, kind: input, shape index: {}]
  %s2 = inlined_call_operand.vmem [shape: bf16[32,768], index: 2, kind: input, shape index: {}]
  %s3 = inlined_call_operand.vmem [shape: f32[144,128], index: 3, kind: input, shape index: {}]
  %s4 = inlined_call_operand.vmem [shape: f32[8,128], index: 4, kind: output, shape index: {}]
  %s5 = sld [smem:[#allocation0]]
  $region26: #{vid_text_forward.1} parent=0
    _
  %s7 = ssub.s32 1, %s5
  %s8 = scalar_select 0, %s7, %s5
  // Predicated region
  $region2: #{vid_text_forward.1} parent=0 // pred_check
    _
  $region3: #{vid_text_forward.1} parent=0 // pred_check_branch
    %10 = sbr.rel (0) target = $region5
  $region4: #{vid_text_forward.1} parent=0 // pred_region
    _
  $region5: #{vid_text_forward.1} parent=0 // pred_fallthru
    _
  // Predicated region
  $region6: #{vid_text_forward.1} parent=0 // pred_check
    _
  $region7: #{vid_text_forward.1} parent=0 // pred_check_branch
    %12 = sbr.rel (0) target = $region9
  $region8: #{vid_text_forward.1} parent=0 // pred_region
    _
  $region9: #{vid_text_forward.1} parent=0 // pred_fallthru
    _
  // Predicated region
  $region10: #{vid_text_forward.1} parent=0 // pred_check
    _
  $region11: #{vid_text_forward.1} parent=0 // pred_check_branch
    %14 = sbr.rel (0) target = $region13
  $region12: #{vid_text_forward.1} parent=0 // pred_region
    _
  $region13: #{vid_text_forward.1} parent=0 // pred_fallthru
    _
  // Predicated region
  $region14: #{vid_text_forward.1} parent=0 // pred_check
    _
  $region15: #{vid_text_forward.1} parent=0 // pred_check_branch
    %16 = sbr.rel (0) target = $region17
  $region16: #{vid_text_forward.1} parent=0 // pred_region
    _
  $region17: #{vid_text_forward.1} parent=0 // pred_fallthru
    _
  %v17 = vld [vmem:[%s0] sm:$0xff]
  %vm18 = vcmask 261120
  %v19 = vsel %vm18, %v17, 0.0
  %v20 = vrot.slane %v19, 4
  %v21 = vadd.f32 %v19, %v20
  %v22 = vrot.slane %v21, 2
  %v23 = vadd.f32 %v21, %v22
  %v24 = vrot.slane %v23, 1
  %v25 = vadd.f32 %v23, %v24
  %v26 = vrcp.pop 8.0
  %v27 = vmul.f32 %v25, %v26
  %v28 = vld [vmem:[%s3 + $0x40] sm:$0xff]
  %v29 = vld [vmem:[%s3 + $0x48] sm:$0xff]
  %v30 = vld [vmem:[%s3 + $0x50] sm:$0xff]
  %v31 = vld [vmem:[%s3 + $0x58] sm:$0xff]
  %v32 = vld [vmem:[%s2] sm:$0xff]
  %v33 = vld [vmem:[%s2 + $0x8] sm:$0xff]
  %v34 = vld [vmem:[%s2 + $0x10] sm:$0xff]
  %v35 = vld [vmem:[%s2 + $0x18] sm:$0xff]
  %v36 = vld [vmem:[%s2 + $0x20] sm:$0xff]
  %v37 = vld [vmem:[%s2 + $0x28] sm:$0xff]
  %v38 = vld [vmem:[%s2 + $0x30] sm:$0xff]
  %v39 = vld [vmem:[%s2 + $0x38] sm:$0xff]
  %v40 = vld [vmem:[%s2 + $0x40] sm:$0xff]
  %v41 = vld [vmem:[%s2 + $0x48] sm:$0xff]
  %v42 = vld [vmem:[%s2 + $0x50] sm:$0xff]
  %v43 = vld [vmem:[%s2 + $0x58] sm:$0xff]
  %v44 = vunpack.c.l.bf16 %v32
  %v45 = vunpack.c.h.bf16 %v32
  %v46 = vunpack.c.l.bf16 %v33
  %v47 = vunpack.c.h.bf16 %v33
  %v48 = vunpack.c.l.bf16 %v34
  %v49 = vunpack.c.h.bf16 %v34
  %v50 = vunpack.c.l.bf16 %v35
  %v51 = vunpack.c.h.bf16 %v35
  %v52 = vunpack.c.l.bf16 %v36
  %v53 = vunpack.c.h.bf16 %v36
  %v54 = vunpack.c.l.bf16 %v37
  %v55 = vunpack.c.h.bf16 %v37
  %v56 = vunpack.c.l.bf16 %v38
  %v57 = vunpack.c.h.bf16 %v38
  %v58 = vunpack.c.l.bf16 %v39
  %v59 = vunpack.c.h.bf16 %v39
  %v60 = vunpack.c.l.bf16 %v40
  %v61 = vunpack.c.h.bf16 %v40
  %v62 = vunpack.c.l.bf16 %v41
  %v63 = vunpack.c.h.bf16 %v41
  %v64 = vunpack.c.l.bf16 %v42
  %v65 = vunpack.c.h.bf16 %v42
  %v66 = vunpack.c.l.bf16 %v43
  %v67 = vunpack.c.h.bf16 %v43
  %v68 = vld [vmem:[%s1] sm:$0xff]
  %v69 = vld [vmem:[%s1 + $0x8] sm:$0xff]
  %v70 = vld [vmem:[%s1 + $0x10] sm:$0xff]
  %v71 = vld [vmem:[%s1 + $0x18] sm:$0xff]
  %v72 = vld [vmem:[%s1 + $0x20] sm:$0xff]
  %v73 = vld [vmem:[%s1 + $0x28] sm:$0xff]
  %74 = vmatprep.subr.mxu0 %v45
  %75 = vmatpush1.xpose.msra.mxu0 %v44
  %76 = vmatprep.subr.mxu0 %v51
  %77 = vmatpush1.xpose.msra.mxu0 %v50
  %78 = vmatprep.subr.mxu0 %v57
  %79 = vmatpush1.xpose.msra.mxu0 %v56
  %80 = vmatprep.subr.mxu0 %v63
  %81 = vmatpush1.xpose.msra.mxu0 %v62
  %82 = vmatprep.subr.mxu0 0.0
  %83 = vmatpush1.xpose.msra.mxu0 0.0
  %84 = vmatprep.subr.mxu0 0.0
  %85 = vmatpush1.xpose.msra.mxu0 0.0
  %86 = vmatprep.subr.mxu0 0.0
  %87 = vmatpush1.xpose.msra.mxu0 0.0
  %88 = vmatprep.subr.mxu0 0.0
  %89 = vmatpush1.xpose.msra.mxu0 0.0
  %90 = vmatprep.subr.mxu0 0.0
  %91 = vmatpush1.xpose.msra.mxu0 0.0
  %92 = vmatprep.subr.mxu0 0.0
  %93 = vmatpush1.xpose.msra.mxu0 0.0
  %94 = vmatprep.subr.mxu0 0.0
  %95 = vmatpush1.xpose.msra.mxu0 0.0
  %96 = vmatprep.subr.mxu0 0.0
  %97 = vmatpush1.xpose.msra.mxu0 0.0
  %98 = vmatprep.subr.mxu0 0.0
  %99 = vmatpush1.xpose.msra.mxu0 0.0
  %100 = vmatprep.subr.mxu0 0.0
  %101 = vmatpush1.xpose.msra.mxu0 0.0
  %102 = vmatprep.subr.mxu0 0.0
  %103 = vmatpush1.xpose.msra.mxu0 0.0
  %104 = vmatprep.subr.mxu0 0.0
  %105 = vmatpush1.xpose.msra.mxu0 0.0
  %106 = vmatprep.subr.mxu0 0.0
  %107 = vmatpush1.xpose.msra.mxu0 0.0
  %108 = vmatprep.subr.mxu0 0.0
  %109 = vmatpush1.xpose.msra.mxu0 0.0
  %110 = vmatprep.subr.mxu0 0.0
  %111 = vmatpush1.xpose.msra.mxu0 0.0
  %112 = vmatprep.subr.mxu0 0.0
  %113 = vmatpush1.xpose.msra.mxu0 0.0
  %114 = vmatprep.subr.mxu0 0.0
  %115 = vmatpush1.xpose.msra.mxu0 0.0
  %116 = vmatprep.subr.mxu0 0.0
  %117 = vmatpush1.xpose.msra.mxu0 0.0
  %118 = vmatprep.subr.mxu0 0.0
  %119 = vmatpush1.xpose.msra.mxu0 0.0
  %120 = vmatprep.subr.mxu0 0.0
  %121 = vmatpush1.xpose.msra.mxu0 0.0
  %122 = vmatprep.subr.mxu0 0.0
  %123 = vmatpush1.xpose.msra.mxu0 0.0
  %124 = vmatprep.subr.mxu0 0.0
  %125 = vmatpush1.xpose.msra.mxu0 0.0
  %126 = vmatprep.subr.mxu0 0.0
  %127 = vmatpush1.xpose.msra.mxu0 0.0
  %128 = vmatprep.subr.mxu0 0.0
  %129 = vmatpush1.xpose.msra.mxu0 0.0
  %130 = vmatprep.subr.mxu0 0.0
  %131 = vmatpush1.xpose.msra.mxu0 0.0
  %132 = vmatprep.subr.mxu0 0.0
  %133 = vmatpush1.xpose.msra.mxu0 0.0
  %134 = vmatprep.subr.mxu0 0.0
  %135 = vmatpush1.xpose.msra.mxu0 0.0
  %136 = vmatprep.subr.mxu0 0.0
  %137 = vmatpush1.xpose.msra.mxu0 0.0
  %138 = vmatprep.mubr.f32.mxu0 %v69
  %139 = vmatmul.mubr.f32.gmra.mrb[0].mxu0 %v68
  %v140 = vpop.f32.mrb[0].mxu0
  %v141 = vadd.f32 0.0, %v140
  %v142 = vpop.f32.mrb[0].mxu0
  %143 = vdwg.mxu0
  %144 = vmatprep.subr.mxu0 %v47
  %145 = vmatpush1.xpose.msra.mxu0 %v46
  %146 = vmatprep.subr.mxu0 %v53
  %147 = vmatpush1.xpose.msra.mxu0 %v52
  %148 = vmatprep.subr.mxu0 %v59
  %149 = vmatpush1.xpose.msra.mxu0 %v58
  %150 = vmatprep.subr.mxu0 %v65
  %151 = vmatpush1.xpose.msra.mxu0 %v64
  %152 = vmatprep.subr.mxu0 0.0
  %153 = vmatpush1.xpose.msra.mxu0 0.0
  %154 = vmatprep.subr.mxu0 0.0
  %155 = vmatpush1.xpose.msra.mxu0 0.0
  %156 = vmatprep.subr.mxu0 0.0
  %157 = vmatpush1.xpose.msra.mxu0 0.0
  %158 = vmatprep.subr.mxu0 0.0
  %159 = vmatpush1.xpose.msra.mxu0 0.0
  %160 = vmatprep.subr.mxu0 0.0
  %161 = vmatpush1.xpose.msra.mxu0 0.0
  %162 = vmatprep.subr.mxu0 0.0
  %163 = vmatpush1.xpose.msra.mxu0 0.0
  %164 = vmatprep.subr.mxu0 0.0
  %165 = vmatpush1.xpose.msra.mxu0 0.0
  %166 = vmatprep.subr.mxu0 0.0
  %167 = vmatpush1.xpose.msra.mxu0 0.0
  %168 = vmatprep.subr.mxu0 0.0
  %169 = vmatpush1.xpose.msra.mxu0 0.0
  %170 = vmatprep.subr.mxu0 0.0
  %171 = vmatpush1.xpose.msra.mxu0 0.0
  %172 = vmatprep.subr.mxu0 0.0
  %173 = vmatpush1.xpose.msra.mxu0 0.0
  %174 = vmatprep.subr.mxu0 0.0
  %175 = vmatpush1.xpose.msra.mxu0 0.0
  %176 = vmatprep.subr.mxu0 0.0
  %177 = vmatpush1.xpose.msra.mxu0 0.0
  %178 = vmatprep.subr.mxu0 0.0
  %179 = vmatpush1.xpose.msra.mxu0 0.0
  %180 = vmatprep.subr.mxu0 0.0
  %181 = vmatpush1.xpose.msra.mxu0 0.0
  %182 = vmatprep.subr.mxu0 0.0
  %183 = vmatpush1.xpose.msra.mxu0 0.0
  %184 = vmatprep.subr.mxu0 0.0
  %185 = vmatpush1.xpose.msra.mxu0 0.0
  %186 = vmatprep.subr.mxu0 0.0
  %187 = vmatpush1.xpose.msra.mxu0 0.0
  %188 = vmatprep.subr.mxu0 0.0
  %189 = vmatpush1.xpose.msra.mxu0 0.0
  %190 = vmatprep.subr.mxu0 0.0
  %191 = vmatpush1.xpose.msra.mxu0 0.0
  %192 = vmatprep.subr.mxu0 0.0
  %193 = vmatpush1.xpose.msra.mxu0 0.0
  %194 = vmatprep.subr.mxu0 0.0
  %195 = vmatpush1.xpose.msra.mxu0 0.0
  %196 = vmatprep.subr.mxu0 0.0
  %197 = vmatpush1.xpose.msra.mxu0 0.0
  %198 = vmatprep.subr.mxu0 0.0
  %199 = vmatpush1.xpose.msra.mxu0 0.0
  %200 = vmatprep.subr.mxu0 0.0
  %201 = vmatpush1.xpose.msra.mxu0 0.0
  %202 = vmatprep.subr.mxu0 0.0
  %203 = vmatpush1.xpose.msra.mxu0 0.0
  %204 = vmatprep.subr.mxu0 0.0
  %205 = vmatpush1.xpose.msra.mxu0 0.0
  %206 = vmatprep.subr.mxu0 0.0
  %207 = vmatpush1.xpose.msra.mxu0 0.0
  %208 = vmatprep.mubr.f32.mxu0 %v71
  %209 = vmatmul.mubr.f32.gmra.mrb[0].mxu0 %v70
  %v210 = vpop.f32.mrb[0].mxu0
  %v211 = vadd.f32 %v141, %v210
  %v212 = vpop.f32.mrb[0].mxu0
  %213 = vdwg.mxu0
  %214 = vmatprep.subr.mxu0 %v49
  %215 = vmatpush1.xpose.msra.mxu0 %v48
  %216 = vmatprep.subr.mxu0 %v55
  %217 = vmatpush1.xpose.msra.mxu0 %v54
  %218 = vmatprep.subr.mxu0 %v61
  %219 = vmatpush1.xpose.msra.mxu0 %v60
  %220 = vmatprep.subr.mxu0 %v67
  %221 = vmatpush1.xpose.msra.mxu0 %v66
  %222 = vmatprep.subr.mxu0 0.0
  %223 = vmatpush1.xpose.msra.mxu0 0.0
  %224 = vmatprep.subr.mxu0 0.0
  %225 = vmatpush1.xpose.msra.mxu0 0.0
  %226 = vmatprep.subr.mxu0 0.0
  %227 = vmatpush1.xpose.msra.mxu0 0.0
  %228 = vmatprep.subr.mxu0 0.0
  %229 = vmatpush1.xpose.msra.mxu0 0.0
  %230 = vmatprep.subr.mxu0 0.0
  %231 = vmatpush1.xpose.msra.mxu0 0.0
  %232 = vmatprep.subr.mxu0 0.0
  %233 = vmatpush1.xpose.msra.mxu0 0.0
  %234 = vmatprep.subr.mxu0 0.0
  %235 = vmatpush1.xpose.msra.mxu0 0.0
  %236 = vmatprep.subr.mxu0 0.0
  %237 = vmatpush1.xpose.msra.mxu0 0.0
  %238 = vmatprep.subr.mxu0 0.0
  %239 = vmatpush1.xpose.msra.mxu0 0.0
  %240 = vmatprep.subr.mxu0 0.0
  %241 = vmatpush1.xpose.msra.mxu0 0.0
  %242 = vmatprep.subr.mxu0 0.0
  %243 = vmatpush1.xpose.msra.mxu0 0.0
  %244 = vmatprep.subr.mxu0 0.0
  %245 = vmatpush1.xpose.msra.mxu0 0.0
  %246 = vmatprep.subr.mxu0 0.0
  %247 = vmatpush1.xpose.msra.mxu0 0.0
  %248 = vmatprep.subr.mxu0 0.0
  %249 = vmatpush1.xpose.msra.mxu0 0.0
  %250 = vmatprep.subr.mxu0 0.0
  %251 = vmatpush1.xpose.msra.mxu0 0.0
  %252 = vmatprep.subr.mxu0 0.0
  %253 = vmatpush1.xpose.msra.mxu0 0.0
  %254 = vmatprep.subr.mxu0 0.0
  %255 = vmatpush1.xpose.msra.mxu0 0.0
  %256 = vmatprep.subr.mxu0 0.0
  %257 = vmatpush1.xpose.msra.mxu0 0.0
  %258 = vmatprep.subr.mxu0 0.0
  %259 = vmatpush1.xpose.msra.mxu0 0.0
  %260 = vmatprep.subr.mxu0 0.0
  %261 = vmatpush1.xpose.msra.mxu0 0.0
  %262 = vmatprep.subr.mxu0 0.0
  %263 = vmatpush1.xpose.msra.mxu0 0.0
  %264 = vmatprep.subr.mxu0 0.0
  %265 = vmatpush1.xpose.msra.mxu0 0.0
  %266 = vmatprep.subr.mxu0 0.0
  %267 = vmatpush1.xpose.msra.mxu0 0.0
  %268 = vmatprep.subr.mxu0 0.0
  %269 = vmatpush1.xpose.msra.mxu0 0.0
  %270 = vmatprep.subr.mxu0 0.0
  %271 = vmatpush1.xpose.msra.mxu0 0.0
  %272 = vmatprep.subr.mxu0 0.0
  %273 = vmatpush1.xpose.msra.mxu0 0.0
  %274 = vmatprep.subr.mxu0 0.0
  %275 = vmatpush1.xpose.msra.mxu0 0.0
  %276 = vmatprep.subr.mxu0 0.0
  %277 = vmatpush1.xpose.msra.mxu0 0.0
  %278 = vmatprep.mubr.f32.mxu0 %v73
  %279 = vmatmul.mubr.f32.gmra.mrb[0].mxu0 %v72
  %v280 = vpop.f32.mrb[0].mxu0
  %v281 = vadd.f32 %v211, %v280
  %v282 = vpop.f32.mrb[0].mxu0
  %283 = vdwg.mxu0
  %v284 = vsel %vm18, %v281, 0.0
  %v285 = vrot.slane %v284, 4
  %v286 = vadd.f32 %v284, %v285
  %v287 = vrot.slane %v286, 2
  %v288 = vadd.f32 %v286, %v287
  %v289 = vrot.slane %v288, 1
  %v290 = vadd.f32 %v288, %v289
  %v291 = vmul.f32 %v290, %v26
  %v292 = vld [vmem:[%s3 + $0x60] sm:$0xff]
  %v293 = vld [vmem:[%s3 + $0x68] sm:$0xff]
  %v294 = vld [vmem:[%s3 + $0x70] sm:$0xff]
  %v295 = vld [vmem:[%s3 + $0x78] sm:$0xff]
  %v297 = vsel %vm18, %v291, 0
  %299 = vmatprep.subr.mxu0 0.0
  %300 = vmatpush1.msra.mxu0 %v292
  %301 = vmatprep.subr.mxu0 0.0
  %302 = vmatpush1.msra.mxu0 %v293
  %303 = vmatprep.subr.mxu0 0.0
  %304 = vmatpush1.msra.mxu0 %v294
  %305 = vmatprep.subr.mxu0 0.0
  %306 = vmatpush1.msra.mxu0 %v295
  %307 = vmatprep.subr.mxu0 0.0
  %308 = vmatpush1.msra.mxu0 0.0
  %309 = vmatprep.subr.mxu0 0.0
  %310 = vmatpush1.msra.mxu0 0.0
  %311 = vmatprep.subr.mxu0 0.0
  %312 = vmatpush1.msra.mxu0 0.0
  %313 = vmatprep.subr.mxu0 0.0
  %314 = vmatpush1.msra.mxu0 0.0
  %315 = vmatprep.subr.mxu0 0.0
  %316 = vmatpush1.msra.mxu0 0.0
  %317 = vmatprep.subr.mxu0 0.0
  %318 = vmatpush1.msra.mxu0 0.0
  %319 = vmatprep.subr.mxu0 0.0
  %320 = vmatpush1.msra.mxu0 0.0
  %321 = vmatprep.subr.mxu0 0.0
  %322 = vmatpush1.msra.mxu0 0.0
  %323 = vmatprep.subr.mxu0 0.0
  %324 = vmatpush1.msra.mxu0 0.0
  %325 = vmatprep.subr.mxu0 0.0
  %326 = vmatpush1.msra.mxu0 0.0
  %327 = vmatprep.subr.mxu0 0.0
  %328 = vmatpush1.msra.mxu0 0.0
  %329 = vmatprep.subr.mxu0 0.0
  %330 = vmatpush1.msra.mxu0 0.0
  %331 = vmatprep.subr.mxu0 0.0
  %332 = vmatpush1.msra.mxu0 0.0
  %333 = vmatprep.subr.mxu0 0.0
  %334 = vmatpush1.msra.mxu0 0.0
  %335 = vmatprep.subr.mxu0 0.0
  %336 = vmatpush1.msra.mxu0 0.0
  %337 = vmatprep.subr.mxu0 0.0
  %338 = vmatpush1.msra.mxu0 0.0
  %339 = vmatprep.subr.mxu0 0.0
  %340 = vmatpush1.msra.mxu0 0.0
  %341 = vmatprep.subr.mxu0 0.0
  %342 = vmatpush1.msra.mxu0 0.0
  %343 = vmatprep.subr.mxu0 0.0
  %344 = vmatpush1.msra.mxu0 0.0
  %345 = vmatprep.subr.mxu0 0.0
  %346 = vmatpush1.msra.mxu0 0.0
  %347 = vmatprep.subr.mxu0 0.0
  %348 = vmatpush1.msra.mxu0 0.0
  %349 = vmatprep.subr.mxu0 0.0
  %350 = vmatpush1.msra.mxu0 0.0
  %351 = vmatprep.subr.mxu0 0.0
  %352 = vmatpush1.msra.mxu0 0.0
  %353 = vmatprep.subr.mxu0 0.0
  %354 = vmatpush1.msra.mxu0 0.0
  %355 = vmatprep.subr.mxu0 0.0
  %356 = vmatpush1.msra.mxu0 0.0
  %357 = vmatprep.subr.mxu0 0.0
  %358 = vmatpush1.msra.mxu0 0.0
  %359 = vmatprep.subr.mxu0 0.0
  %360 = vmatpush1.msra.mxu0 0.0
  %361 = vmatprep.subr.mxu0 0.0
  %362 = vmatpush1.msra.mxu0 0.0
  %363 = vmatprep.mubr.f32.mxu0 0.0
  %364 = vmatmul.mubr.f32.gmra.mrb[0].mxu0 %v297
  %v365 = vpop.f32.mrb[0].mxu0
  %v366 = vadd.f32 0.0, %v365
  %v367 = vpop.f32.mrb[0].mxu0
  %368 = vdwg.mxu0
  %v369 = vld [vmem:[%s3 + $0x80] sm:$0x1]
  %v371 = vsel %vm18, %v27, 0
  %373 = vmatprep.subr.mxu0 0.0
  %374 = vmatpush1.msra.mxu0 %v28
  %375 = vmatprep.subr.mxu0 0.0
  %376 = vmatpush1.msra.mxu0 %v29
  %377 = vmatprep.subr.mxu0 0.0
  %378 = vmatpush1.msra.mxu0 %v30
  %379 = vmatprep.subr.mxu0 0.0
  %380 = vmatpush1.msra.mxu0 %v31
  %381 = vmatprep.subr.mxu0 0.0
  %382 = vmatpush1.msra.mxu0 0.0
  %383 = vmatprep.subr.mxu0 0.0
  %384 = vmatpush1.msra.mxu0 0.0
  %385 = vmatprep.subr.mxu0 0.0
  %386 = vmatpush1.msra.mxu0 0.0
  %387 = vmatprep.subr.mxu0 0.0
  %388 = vmatpush1.msra.mxu0 0.0
  %389 = vmatprep.subr.mxu0 0.0
  %390 = vmatpush1.msra.mxu0 0.0
  %391 = vmatprep.subr.mxu0 0.0
  %392 = vmatpush1.msra.mxu0 0.0
  %393 = vmatprep.subr.mxu0 0.0
  %394 = vmatpush1.msra.mxu0 0.0
  %395 = vmatprep.subr.mxu0 0.0
  %396 = vmatpush1.msra.mxu0 0.0
  %397 = vmatprep.subr.mxu0 0.0
  %398 = vmatpush1.msra.mxu0 0.0
  %399 = vmatprep.subr.mxu0 0.0
  %400 = vmatpush1.msra.mxu0 0.0
  %401 = vmatprep.subr.mxu0 0.0
  %402 = vmatpush1.msra.mxu0 0.0
  %403 = vmatprep.subr.mxu0 0.0
  %404 = vmatpush1.msra.mxu0 0.0
  %405 = vmatprep.subr.mxu0 0.0
  %406 = vmatpush1.msra.mxu0 0.0
  %407 = vmatprep.subr.mxu0 0.0
  %408 = vmatpush1.msra.mxu0 0.0
  %409 = vmatprep.subr.mxu0 0.0
  %410 = vmatpush1.msra.mxu0 0.0
  %411 = vmatprep.subr.mxu0 0.0
  %412 = vmatpush1.msra.mxu0 0.0
  %413 = vmatprep.subr.mxu0 0.0
  %414 = vmatpush1.msra.mxu0 0.0
  %415 = vmatprep.subr.mxu0 0.0
  %416 = vmatpush1.msra.mxu0 0.0
  %417 = vmatprep.subr.mxu0 0.0
  %418 = vmatpush1.msra.mxu0 0.0
  %419 = vmatprep.subr.mxu0 0.0
  %420 = vmatpush1.msra.mxu0 0.0
  %421 = vmatprep.subr.mxu0 0.0
  %422 = vmatpush1.msra.mxu0 0.0
  %423 = vmatprep.subr.mxu0 0.0
  %424 = vmatpush1.msra.mxu0 0.0
  %425 = vmatprep.subr.mxu0 0.0
  %426 = vmatpush1.msra.mxu0 0.0
  %427 = vmatprep.subr.mxu0 0.0
  %428 = vmatpush1.msra.mxu0 0.0
  %429 = vmatprep.subr.mxu0 0.0
  %430 = vmatpush1.msra.mxu0 0.0
  %431 = vmatprep.subr.mxu0 0.0
  %432 = vmatpush1.msra.mxu0 0.0
  %433 = vmatprep.subr.mxu0 0.0
  %434 = vmatpush1.msra.mxu0 0.0
  %435 = vmatprep.subr.mxu0 0.0
  %436 = vmatpush1.msra.mxu0 0.0
  %437 = vmatprep.mubr.f32.mxu0 0.0
  %438 = vmatmul.mubr.f32.gmra.mrb[0].mxu0 %v371
  %v439 = vpop.f32.mrb[0].mxu0
  %v440 = vadd.f32 %v366, %v439
  %v441 = vpop.f32.mrb[0].mxu0
  %442 = vdwg.mxu0
  %v443 = vadd.f32 %v440, %v369
  %v444 = vtanh.pop %v443
  %v445 = vld [vmem:[%s3] sm:$0xff]
  %v446 = vld [vmem:[%s3 + $0x8] sm:$0xff]
  %v447 = vld [vmem:[%s3 + $0x10] sm:$0xff]
  %v448 = vld [vmem:[%s3 + $0x18] sm:$0xff]
  %v449 = vld [vmem:[%s3 + $0x20] sm:$0xff]
  %v450 = vld [vmem:[%s3 + $0x28] sm:$0xff]
  %v451 = vld [vmem:[%s3 + $0x30] sm:$0xff]
  %v452 = vld [vmem:[%s3 + $0x38] sm:$0xff]
  %v453 = vld [vmem:[%s3 + $0x40] sm:$0xff]
  %v454 = vld [vmem:[%s3 + $0x48] sm:$0xff]
  %v455 = vld [vmem:[%s3 + $0x50] sm:$0xff]
  %v456 = vld [vmem:[%s3 + $0x58] sm:$0xff]
  %v457 = vld [vmem:[%s3 + $0x88] sm:$0x1]
  %458 = vmatprep.subr.mxu0 0.0
  %459 = vmatpush1.msra.mxu0 %v445
  %460 = vmatprep.subr.mxu0 0.0
  %461 = vmatpush1.msra.mxu0 %v446
  %462 = vmatprep.subr.mxu0 0.0
  %463 = vmatpush1.msra.mxu0 %v447
  %464 = vmatprep.subr.mxu0 0.0
  %465 = vmatpush1.msra.mxu0 %v448
  %466 = vmatprep.subr.mxu0 0.0
  %467 = vmatpush1.msra.mxu0 %v449
  %468 = vmatprep.subr.mxu0 0.0
  %469 = vmatpush1.msra.mxu0 %v450
  %470 = vmatprep.subr.mxu0 0.0
  %471 = vmatpush1.msra.mxu0 %v451
  %472 = vmatprep.subr.mxu0 0.0
  %473 = vmatpush1.msra.mxu0 %v452
  %474 = vmatprep.subr.mxu0 0.0
  %475 = vmatpush1.msra.mxu0 %v453
  %476 = vmatprep.subr.mxu0 0.0
  %477 = vmatpush1.msra.mxu0 %v454
  %478 = vmatprep.subr.mxu0 0.0
  %479 = vmatpush1.msra.mxu0 %v455
  %480 = vmatprep.subr.mxu0 0.0
  %481 = vmatpush1.msra.mxu0 %v456
  %482 = vmatprep.subr.mxu0 0.0
  %483 = vmatpush1.msra.mxu0 %v292
  %484 = vmatprep.subr.mxu0 0.0
  %485 = vmatpush1.msra.mxu0 %v293
  %486 = vmatprep.subr.mxu0 0.0
  %487 = vmatpush1.msra.mxu0 %v294
  %488 = vmatprep.subr.mxu0 0.0
  %489 = vmatpush1.msra.mxu0 %v295
  %490 = vmatprep.subr.mxu0 0.0
  %491 = vmatpush1.msra.mxu0 0.0
  %492 = vmatprep.subr.mxu0 0.0
  %493 = vmatpush1.msra.mxu0 0.0
  %494 = vmatprep.subr.mxu0 0.0
  %495 = vmatpush1.msra.mxu0 0.0
  %496 = vmatprep.subr.mxu0 0.0
  %497 = vmatpush1.msra.mxu0 0.0
  %498 = vmatprep.subr.mxu0 0.0
  %499 = vmatpush1.msra.mxu0 0.0
  %500 = vmatprep.subr.mxu0 0.0
  %501 = vmatpush1.msra.mxu0 0.0
  %502 = vmatprep.subr.mxu0 0.0
  %503 = vmatpush1.msra.mxu0 0.0
  %504 = vmatprep.subr.mxu0 0.0
  %505 = vmatpush1.msra.mxu0 0.0
  %506 = vmatprep.subr.mxu0 0.0
  %507 = vmatpush1.msra.mxu0 0.0
  %508 = vmatprep.subr.mxu0 0.0
  %509 = vmatpush1.msra.mxu0 0.0
  %510 = vmatprep.subr.mxu0 0.0
  %511 = vmatpush1.msra.mxu0 0.0
  %512 = vmatprep.subr.mxu0 0.0
  %513 = vmatpush1.msra.mxu0 0.0
  %514 = vmatprep.subr.mxu0 0.0
  %515 = vmatpush1.msra.mxu0 0.0
  %516 = vmatprep.subr.mxu0 0.0
  %517 = vmatpush1.msra.mxu0 0.0
  %518 = vmatprep.subr.mxu0 0.0
  %519 = vmatpush1.msra.mxu0 0.0
  %520 = vmatprep.subr.mxu0 0.0
  %521 = vmatpush1.msra.mxu0 0.0
  %522 = vmatprep.mubr.f32.mxu0 0.0
  %523 = vmatmul.mubr.f32.gmra.mrb[0].mxu0 %v444
  %v524 = vpop.f32.mrb[0].mxu0
  %v525 = vadd.f32 %v457, %v524
  %v526 = vpop.f32.mrb[0].mxu0
  %527 = vdwg.mxu0
  %v528 = vlaneseq
  %v529 = vshrl.u32 %v528, 7
  %vm530 = vcmp.eq.s32.totalorder %v529, 0
  %v531 = vlaneseq
  %v532 = vshrl.u32 %v531, 7
  %v533 = vsub.s32 0, %v532
  %v534 = vrot.slane %v525, %v533
  %v535 = vsel %vm530, %v534, 0.0
  %vm536 = vcmp.eq.s32.totalorder %v529, 1
  %v537 = vlaneseq
  %v538 = vshrl.u32 %v537, 7
  %v539 = vsub.s32 0, %v538
  %v540 = vrot.slane %v444, %v539
  %v541 = vsel %vm536, %v540, 0.0
  %v542 = vadd.f32 %v535, %v541
  %543 = vst [vmem:[%s4] sm:$0xff] %v542
  // Predicated region
  $region18: #{vid_text_forward.1} parent=0 // pred_check
    _
  $region19: #{vid_text_forward.1} parent=0 // pred_check_branch
    %545 = sbr.rel (0) target = $region21
  $region20: #{vid_text_forward.1} parent=0 // pred_region
    _
  $region21: #{vid_text_forward.1} parent=0 // pred_fallthru
    _
  // Predicated region
  $region22: #{vid_text_forward.1} parent=0 // pred_check
    _
  $region23: #{vid_text_forward.1} parent=0 // pred_check_branch
    %547 = sbr.rel (0) target = $region25
  $region24: #{vid_text_forward.1} parent=0 // pred_region
    _
  $region25: #{vid_text_forward.1} parent=0 // pred_fallthru
    _

</llo_original>
